<compile_context>
chip_gen: v6e
topology: v6e:2x2x1
jax: 0.10.0
libtpu: 0.0.40
codegen_flags: <defaults>
</compile_context>

<pallas_src>
import functools

import jax
import jax.numpy as jnp
from jax.experimental import pallas as pl
from jax.experimental.pallas import tpu as pltpu

_LANES = 128
_SUBLANES = 8
_MAX_BLOCK_ROWS = 2048  # 2048 * 128 * 4B = 1 MiB f32 per input per grid step


def _round_up(a, b):
    return ((a + b - 1) // b) * b


def _mse_bin_block_kernel(x_ref, gt_ref, out_ref, *, th, use_threshold,
                          n_valid, need_mask):
    """One grid step: (8, 128) partial sum of (x - target)^2 over a row block."""
    x = x_ref[...].astype(jnp.float32)
    gt = gt_ref[...].astype(jnp.float32)
    if use_threshold:
        target = jnp.where(gt >= jnp.float32(th), jnp.float32(1.0), jnp.float32(0.0))
    else:
        target = gt
    d = x - target
    d2 = d * d

    block_rows = x_ref.shape[0]
    if need_mask:
        # Mask lane-padding and out-of-bounds rows of the (grid-padded) last block.
        # int32 element index: fine for < 2**31 elements (>8 GiB f32 per tensor).
        i = pl.program_id(0)
        row = jax.lax.broadcasted_iota(jnp.int32, (block_rows, _LANES), 0)
        lane = jax.lax.broadcasted_iota(jnp.int32, (block_rows, _LANES), 1)
        elem = (i * block_rows + row) * _LANES + lane
        d2 = jnp.where(elem < n_valid, d2, jnp.float32(0.0))

    # Fold (block_rows, 128) -> (8, 128): pure elementwise VALU adds (no XLU).
    partial = d2.reshape(block_rows // _SUBLANES, _SUBLANES, _LANES).sum(axis=0)
    out_ref[0] = partial


def _sum_sq_diff(x_flat, gt_flat, *, th, use_threshold):
    """sum((x - target)^2) over the flattened inputs, via one Pallas reduction."""
    n = x_flat.shape[0]

    # Pad only to the next 128-lane boundary (skipped when already aligned); the
    # padded tail is masked out inside the kernel, so any threshold value is safe.
    pad = (-n) % _LANES
    if pad:
        x_flat = jnp.pad(x_flat, (0, pad))
        gt_flat = jnp.pad(gt_flat, (0, pad))
    rows = (n + pad) // _LANES
    x2d = x_flat.reshape(rows, _LANES)
    g2d = gt_flat.reshape(rows, _LANES)

    block_rows = min(_MAX_BLOCK_ROWS, _round_up(rows, _SUBLANES))
    num_blocks = pl.cdiv(rows, block_rows)
    need_mask = (num_blocks * block_rows * _LANES) != n

    kernel = functools.partial(
        _mse_bin_block_kernel,
        th=float(th),
        use_threshold=use_threshold,
        n_valid=n,
        need_mask=need_mask,
    )

    partials = pl.pallas_call(
        kernel,
        out_shape=jax.ShapeDtypeStruct((num_blocks, _SUBLANES, _LANES), jnp.float32),
        grid=(num_blocks,),
        in_specs=[
            pl.BlockSpec((block_rows, _LANES), lambda i: (i, 0)),
            pl.BlockSpec((block_rows, _LANES), lambda i: (i, 0)),
        ],
        out_specs=pl.BlockSpec((1, _SUBLANES, _LANES), lambda i: (i, 0, 0)),
        compiler_params=pltpu.CompilerParams(
            dimension_semantics=("parallel",),  # megacore-shardable on v7x
        ),
    )(x2d, g2d)

    # Single cross-lane/cross-block reduce, done once in glue.
    return jnp.sum(partials)


def _bilinear_align_corners(gt, out_hw):
    """F.interpolate(gt, out_hw, mode='bilinear', align_corners=True) in JAX glue."""
    b, c, h_in, w_in = gt.shape
    h_out, w_out = out_hw
    gt = gt.astype(jnp.float32)

    def coords(n_out, n_in):
        if n_out == 1:
            return jnp.zeros((n_out,), jnp.float32)
        scale = (n_in - 1) / (n_out - 1)
        return jnp.arange(n_out, dtype=jnp.float32) * scale

    ys = coords(h_out, h_in)
    xs = coords(w_out, w_in)
    y0 = jnp.clip(jnp.floor(ys).astype(jnp.int32), 0, max(h_in - 1, 0))
    x0 = jnp.clip(jnp.floor(xs).astype(jnp.int32), 0, max(w_in - 1, 0))
    y1 = jnp.minimum(y0 + 1, h_in - 1)
    x1 = jnp.minimum(x0 + 1, w_in - 1)
    wy = (ys - y0.astype(jnp.float32))[None, None, :, None]
    wx = (xs - x0.astype(jnp.float32))[None, None, None, :]

    # Single fused advanced-index gather per corner (no chained gathers).
    g00 = gt[:, :, y0[:, None], x0[None, :]]
    g01 = gt[:, :, y0[:, None], x1[None, :]]
    g10 = gt[:, :, y1[:, None], x0[None, :]]
    g11 = gt[:, :, y1[:, None], x1[None, :]]
    top = g00 * (1.0 - wx) + g01 * wx
    bot = g10 * (1.0 - wx) + g11 * wx
    return top * (1.0 - wy) + bot * wy


def mse_bin(x, gt, th=0.2):
    """Forward pass of MSE_bin. x, gt: NCHW arrays (any float dtype)."""
    n = x.size

    if gt.shape[2:] != x.shape[2:]:
        # Faithful to the PyTorch code: when spatial shapes differ, the thresholded
        # map is discarded and the RAW GT is bilinearly resized (align_corners=True).
        # TODO(synk): fuse the bilinear resize into the Pallas kernel (row gather via
        # scalar-prefetch BlockSpec) to avoid materializing the full-res target in HBM.
        target = _bilinear_align_corners(gt, x.shape[2:])
        total = _sum_sq_diff(x.reshape(-1), target.reshape(-1),
                             th=th, use_threshold=False)
    else:
        total = _sum_sq_diff(x.reshape(-1), gt.reshape(-1),
                             th=th, use_threshold=True)
    return (total / jnp.float32(n)).astype(jnp.float32)


if __name__ == "__main__":
    key = jax.random.PRNGKey(0)
    kx, kg, kr = jax.random.split(key, 3)
    # x: predictions in [0,1), GT: ground-truth map in [0,1)
    x = jax.random.uniform(kx, (2, 4, 16, 16), dtype=jnp.float32)
    gt = jax.random.uniform(kg, (2, 4, 16, 16), dtype=jnp.float32)

    # Path 1: same spatial shape -> threshold + MSE inside the kernel.
    out = jax.block_until_ready(mse_bin(x, gt, th=0.2))
    tgt_ref = jnp.where(gt >= 0.2, 1.0, 0.0)
    ref = jnp.mean((x - tgt_ref) ** 2)
    assert jnp.allclose(out, ref, rtol=1e-5, atol=1e-6), (out, ref)

    # Path 2: mismatched spatial shape -> raw GT is bilinearly resized (PyTorch quirk).
    gt_small = jax.random.uniform(kr, (2, 4, 8, 8), dtype=jnp.float32)
    out2 = jax.block_until_ready(mse_bin(x, gt_small, th=0.2))
    ref2 = jnp.mean((x - _bilinear_align_corners(gt_small, (16, 16))) ** 2)
    assert jnp.allclose(out2, ref2, rtol=1e-5, atol=1e-6), (out2, ref2)

    print("KERNEL_OK")
</pallas_src>

<mosaic_0001>
module attributes {stable_mosaic.version = 11 : i64} {
  func.func @_mse_bin_block_kernel(%arg0: i32, %arg1: memref<16x128xf32, #tpu.memory_space<vmem>>, %arg2: memref<16x128xf32, #tpu.memory_space<vmem>>, %arg3: memref<1x8x128xf32, #tpu.memory_space<vmem>>) attributes {dimension_semantics = [#tpu.dimension_semantics<parallel>], iteration_bounds = array<i64: 1>, scalar_prefetch = 0 : i64, scratch_operands = 0 : i64, tpu.core_type = #tpu.core_type<tc>, window_params = [{transform_indices = @transform_0, window_bounds = array<i64: 16, 128>}, {transform_indices = @transform_1, window_bounds = array<i64: 16, 128>}, {transform_indices = @transform_2, window_bounds = array<i64: 1, 8, 128>}]} {
    %c0 = arith.constant 0 : index
    %c0_0 = arith.constant 0 : index
    %0 = vector.load %arg1[%c0, %c0_0] : memref<16x128xf32, #tpu.memory_space<vmem>>, vector<16x128xf32>
    %c0_1 = arith.constant 0 : index
    %c0_2 = arith.constant 0 : index
    %1 = vector.load %arg2[%c0_1, %c0_2] : memref<16x128xf32, #tpu.memory_space<vmem>>, vector<16x128xf32>
    %cst = arith.constant 2.000000e-01 : f32
    %2 = vector.broadcast %cst : f32 to vector<16x128xf32>
    %3 = arith.cmpf oge, %1, %2 : vector<16x128xf32>
    %cst_3 = arith.constant 1.000000e+00 : f32
    %cst_4 = arith.constant 0.000000e+00 : f32
    %4 = vector.broadcast %cst_3 : f32 to vector<16x128xf32>
    %5 = vector.broadcast %cst_4 : f32 to vector<16x128xf32>
    %6 = arith.select %3, %4, %5 : vector<16x128xi1>, vector<16x128xf32>
    %7 = arith.subf %0, %6 : vector<16x128xf32>
    %8 = arith.mulf %7, %7 : vector<16x128xf32>
    %9 = vector.shape_cast %8 : vector<16x128xf32> to vector<2x8x128xf32>
    %cst_5 = arith.constant dense<0.000000e+00> : vector<8x128xf32>
    %10 = vector.multi_reduction <add>, %9, %cst_5 [0] : vector<2x8x128xf32> to vector<8x128xf32>
    %c0_6 = arith.constant 0 : index
    %c0_7 = arith.constant 0 : index
    %c0_8 = arith.constant 0 : index
    %11 = vector.load %arg3[%c0_6, %c0_7, %c0_8] : memref<1x8x128xf32, #tpu.memory_space<vmem>>, vector<1x8x128xf32>
    %12 = vector.shape_cast %11 : vector<1x8x128xf32> to vector<8x128xf32>
    %13 = vector.shape_cast %10 : vector<8x128xf32> to vector<1x8x128xf32>
    tpu.vector_store %arg3[%c0_6, %c0_7, %c0_8], %13 {strides = array<i32>} : memref<1x8x128xf32, #tpu.memory_space<vmem>>, vector<1x8x128xf32>,
    return
  }
  func.func @transform_0(%arg0: i32) -> (i32, i32) {
    %c0_i32 = arith.constant 0 : i32
    %c0_i32_0 = arith.constant 0 : i32
    return %arg0, %c0_i32 : i32, i32
  }
  func.func @transform_1(%arg0: i32) -> (i32, i32) {
    %c0_i32 = arith.constant 0 : i32
    %c0_i32_0 = arith.constant 0 : i32
    return %arg0, %c0_i32 : i32, i32
  }
  func.func @transform_2(%arg0: i32) -> (i32, i32, i32) {
    %c0_i32 = arith.constant 0 : i32
    %c0_i32_0 = arith.constant 0 : i32
    %c0_i32_1 = arith.constant 0 : i32
    return %arg0, %c0_i32, %c0_i32_0 : i32, i32, i32
  }
}

</mosaic_0001>

<llo_original>
// kernel: tpu_custom_call.1
$region0: #{tpu_custom_call.1}
  #allocation0 [shape = 'u32[]', space=smem, size = 0x4, offset = 0x4, fixed_abs, tag = 'smem constant byte address 0x4 - core index']
  #allocation1 [shape = 'u32[144,128]{1,0:T(1,128)}', space=vmem, size = 0x12000, scoped, tag = 'internal scratch']
  %s0 = inlined_call_operand.hbm [shape: f32[16,128], index: 0, kind: input, shape index: {}]
  %s1 = inlined_call_operand.hbm [shape: f32[16,128], index: 1, kind: input, shape index: {}]
  %s2 = inlined_call_operand.hbm [shape: f32[1,8,128], index: 2, kind: output, shape index: {}]
  %s3 = sld [smem:[#allocation0]]
  $region26: #{tpu_custom_call.1} parent=0
    _
  %s5 = ssub.s32 1, %s3
  %s6 = scalar_select 0, %s5, %s3
  $region1: #{tpu_custom_call.1} parent=0
    #allocation2 [shape = 'u8[8192]{0}', space=vmem, size = 0x2000, scoped, tag = 'input window, operand 0, single buffered']
    #allocation3 [shape = 's32[1]{0}', space=sflag, size = 0x4, scoped, tag = 'scoped memory for tpu_custom_call.1']
    #allocation4 [shape = 's32[1]{0}', space=sflag, size = 0x4, scoped, tag = 'scoped memory for tpu_custom_call.1']
    #allocation5 [shape = 'u8[8192]{0}', space=vmem, size = 0x2000, scoped, tag = 'input window, operand 1, single buffered']
    #allocation6 [shape = 's32[1]{0}', space=sflag, size = 0x4, scoped, tag = 'scoped memory for tpu_custom_call.1']
    #allocation7 [shape = 'u8[4096]{0}', space=vmem, size = 0x1000, scoped, tag = 'output window, operand 0, single buffered']
    %7 = vsyncpa [#allocation3], 0
    %8 = vsyncpa [#allocation6], 0
    %9 = vsyncpa [#allocation4], 0
    // Predicated region
    $region2: #{tpu_custom_call.1} parent=1 // pred_check
      _
    $region3: #{tpu_custom_call.1} parent=1 // pred_check_branch
      %11 = sbr.rel (0) target = $region5
    $region4: #{tpu_custom_call.1} parent=1 // pred_region
      %s13 = ssub.s32 256, 256
      %14 = vsyncadd [#allocation3], %s13
      %s15 = sshll.u32 [#allocation2], 4
      %s16 = int_to_ptr.vmem [resolvable:$true] %s15
      %21 = dma.hbm_to_vmem [thread:$0]  %s0, 256, %s16, [#allocation3], 128, 128, 8
    $region5: #{tpu_custom_call.1} parent=1 // pred_fallthru
      _
    // Predicated region
    $region6: #{tpu_custom_call.1} parent=1 // pred_check
      _
    $region7: #{tpu_custom_call.1} parent=1 // pred_check_branch
      %23 = sbr.rel (0) target = $region9
    $region8: #{tpu_custom_call.1} parent=1 // pred_region
      %s25 = ssub.s32 256, 256
      %26 = vsyncadd [#allocation6], %s25
      %s27 = sshll.u32 [#allocation5], 4
      %s28 = int_to_ptr.vmem [resolvable:$true] %s27
      %33 = dma.hbm_to_vmem [thread:$0]  %s1, 256, %s28, [#allocation6], 128, 128, 8
    $region9: #{tpu_custom_call.1} parent=1 // pred_fallthru
      _
    // Predicated region
    $region10: #{tpu_custom_call.1} parent=1 // pred_check
      _
    $region11: #{tpu_custom_call.1} parent=1 // pred_check_branch
      %35 = sbr.rel (0) target = $region13
    $region12: #{tpu_custom_call.1} parent=1 // pred_region
      %36 = dma.done [#allocation3], 256
    $region13: #{tpu_custom_call.1} parent=1 // pred_fallthru
      _
    // Predicated region
    $region14: #{tpu_custom_call.1} parent=1 // pred_check
      _
    $region15: #{tpu_custom_call.1} parent=1 // pred_check_branch
      %38 = sbr.rel (0) target = $region17
    $region16: #{tpu_custom_call.1} parent=1 // pred_region
      %39 = dma.done [#allocation6], 256
    $region17: #{tpu_custom_call.1} parent=1 // pred_fallthru
      _
    %v40 = vld [vmem:[#allocation2] sm:$0xff]
    %v41 = vld [vmem:[#allocation2 + $0x8] sm:$0xff]
    %v42 = vld [vmem:[#allocation5] sm:$0xff]
    %v43 = vld [vmem:[#allocation5 + $0x8] sm:$0xff]
    %vm44 = vcmp.ge.f32.partialorder %v42, 0.2
    %vm45 = vcmp.ge.f32.partialorder %v43, 0.2
    %v46 = vsel %vm44, 1.0, 0.0
    %v47 = vsel %vm45, 1.0, 0.0
    %v48 = vsub.f32 %v40, %v46
    %v49 = vsub.f32 %v41, %v47
    %v50 = vmul.f32 %v48, %v48
    %v51 = vmul.f32 %v49, %v49
    %v52 = vadd.f32 %v50, %v51
    %53 = vst [vmem:[#allocation7] sm:$0xff] %v52
    // Predicated region
    $region18: #{tpu_custom_call.1} parent=1 // pred_check
      _
    $region19: #{tpu_custom_call.1} parent=1 // pred_check_branch
      %55 = sbr.rel (0) target = $region21
    $region20: #{tpu_custom_call.1} parent=1 // pred_region
      %s57 = ssub.s32 128, 128
      %58 = vsyncadd [#allocation4], %s57
      %s60 = sshll.u32 [#allocation7], 4
      %s61 = int_to_ptr.vmem [resolvable:$true] %s60
      %63 = dma.vmem_to_hbm [thread:$0]  %s61, 128, %s2, [#allocation4]
    $region21: #{tpu_custom_call.1} parent=1 // pred_fallthru
      _
    // Predicated region
    $region22: #{tpu_custom_call.1} parent=1 // pred_check
      _
    $region23: #{tpu_custom_call.1} parent=1 // pred_check_branch
      %65 = sbr.rel (0) target = $region25
    $region24: #{tpu_custom_call.1} parent=1 // pred_region
      %66 = dma.done [#allocation4], 128
    $region25: #{tpu_custom_call.1} parent=1 // pred_fallthru
      _
    %67 = vsyncpa [#allocation3], 1
    %68 = vsyncpa [#allocation6], 1
    %69 = vsyncpa [#allocation4], 1

</llo_original>
